<compile_context>
chip_gen: v5e
topology: v5e:2x2
jax: 0.10.0
libtpu: 0.0.40
codegen_flags: <defaults>
</compile_context>

<pallas_src>
import functools

import jax
import jax.numpy as jnp
from jax.experimental import pallas as pl
from jax.experimental.pallas import tpu as pltpu

HIDDEN = 64
OUT_PAD = 8          # sublane-aligned row count for the last (tiny) layer


def _round_up(n, m):
    return ((n + m - 1) // m) * m


def _in_rows(input_dim):
    # rows of x^T: input_dim data rows + 1 ones row + 2 spare (b2/b3 columns
    # of the aug operand multiply these zero rows), sublane-aligned.
    return _round_up(input_dim + 3, 8)


def pack_w1_aug(params, input_dim, out_dim):
    """(64, in_rows) operand: [W1^T | b1 | b2 | b3(pad) | 0...]."""
    in_rows = _in_rows(input_dim)
    aug = jnp.zeros((HIDDEN, in_rows), jnp.float32)
    aug = aug.at[:, :input_dim].set(params["w1"].T)          # (64, input_dim)
    aug = aug.at[:, input_dim].set(params["b1"].reshape(-1))  # bias-fold column
    aug = aug.at[:, input_dim + 1].set(params["b2"].reshape(-1))
    aug = aug.at[:out_dim, input_dim + 2].set(params["b3"].reshape(-1))
    return aug


def pack_w23(params, out_dim):
    """(72, 64) slab: rows 0..63 = W2^T, rows 64..71 = W3^T zero-padded."""
    slab = jnp.zeros((HIDDEN + OUT_PAD, HIDDEN), jnp.float32)
    slab = slab.at[:HIDDEN, :].set(params["w2"].T)
    slab = slab.at[HIDDEN:HIDDEN + out_dim, :].set(params["w3"].T)
    return slab


def policy_kernel(x_ref, w1_ref, slab_ref, o_ref, *, input_dim, out_dim):
    xT = x_ref[...]                                  # (in_rows, TB): obs^T, ones, 0
    w1aug = w1_ref[...]                              # (64, in_rows)
    w2t = slab_ref[0:HIDDEN, :]                      # (64, 64)
    w3t = slab_ref[HIDDEN:HIDDEN + OUT_PAD, :]       # (8, 64), rows >= out_dim are 0

    b2 = w1aug[:, input_dim + 1:input_dim + 2]       # (64, 1) column
    b3 = w1aug[0:OUT_PAD, input_dim + 2:input_dim + 3]   # (8, 1) column

    # Layer 1 on the MXU (idle slot); b1 folded in via the ones row of xT.
    h1 = jnp.maximum(
        jnp.dot(w1aug, xT, preferred_element_type=jnp.float32), 0.0)  # (64, TB)

    # Layer 2: MXU matmul + lane-broadcast bias + ReLU.
    h2 = jnp.maximum(
        jnp.dot(w2t, h1, preferred_element_type=jnp.float32) + b2, 0.0)  # (64, TB)

    # Layer 3: MXU matmul on the zero-padded W3^T.
    z = jnp.dot(w3t, h2, preferred_element_type=jnp.float32) + b3        # (8, TB)

    if out_dim == 2:
        # 2-class log-softmax via stable softplus: no cross-lane reductions,
        # two lane-dense sublane stores (no concatenate temp).
        l0 = z[0:1, :]
        l1 = z[1:2, :]
        d = l1 - l0
        sp = jnp.maximum(d, 0.0) + jnp.log(1.0 + jnp.exp(-jnp.abs(d)))
        o_ref[0:1, :] = -sp
        o_ref[1:2, :] = d - sp
    else:
        logits = z[:out_dim, :]
        m = jnp.max(logits, axis=0, keepdims=True)
        zc = logits - m
        lse = jnp.log(jnp.sum(jnp.exp(zc), axis=0, keepdims=True))
        o_ref[...] = zc - lse


def policy_network_forward(x, w1_aug, w23_slab, *, input_dim, out_dim,
                           block_b=1024):
    """x: (B, input_dim) f32.  Returns (B, out_dim) log-probs."""
    B = x.shape[0]
    in_rows = w1_aug.shape[1]

    # Lane-dense batch tile (multiple of 128), large to amortize step overhead,
    # but capped so the grid has >=2 steps when the batch allows (v7x dual TC).
    B128 = _round_up(B, 128)
    TB = min(_round_up(block_b, 128), B128)
    if B128 >= 2 * 128:
        TB = min(TB, max(128, _round_up(B128 // 2, 128)))
    B_pad = _round_up(B, TB)
    grid = (B_pad // TB,)

    # Host-side packing: feature-major x^T with the ones (bias) row.
    xT = jnp.zeros((in_rows, B_pad), jnp.float32)
    xT = xT.at[:input_dim, :B].set(x.astype(jnp.float32).T)
    xT = xT.at[input_dim, :].set(1.0)

    kernel = functools.partial(policy_kernel, input_dim=input_dim,
                               out_dim=out_dim)

    cost = pl.CostEstimate(
        flops=2 * B_pad * (in_rows * HIDDEN + HIDDEN * HIDDEN + HIDDEN * OUT_PAD),
        transcendentals=2 * B_pad,
        bytes_accessed=(in_rows + out_dim) * B_pad * 4
        + (w1_aug.size + w23_slab.size) * 4,
    )

    outT = pl.pallas_call(
        kernel,
        out_shape=jax.ShapeDtypeStruct((out_dim, B_pad), jnp.float32),
        grid_spec=pltpu.PrefetchScalarGridSpec(
            num_scalar_prefetch=0,
            grid=grid,
            in_specs=[
                # activation stream: tiled over batch (lanes), lane-dense
                pl.BlockSpec((in_rows, TB), lambda i: (0, i)),
                # params: same block every step -> stay VMEM-resident
                pl.BlockSpec(w1_aug.shape, lambda i: (0, 0)),
                pl.BlockSpec(w23_slab.shape, lambda i: (0, 0)),
            ],
            out_specs=pl.BlockSpec((out_dim, TB), lambda i: (0, i)),
        ),
        compiler_params=pltpu.CompilerParams(
            dimension_semantics=("parallel",),   # shards grid steps on v7x TCs
        ),
        cost_estimate=cost,
    )(xT, w1_aug, w23_slab)

    return outT[:, :B].T


def init_params(key, input_dim, output_dim, hidden=HIDDEN):
    """Deterministic synthetic init (PyTorch-like uniform fan-in scaling)."""
    ks = jax.random.split(key, 6)

    def lin(kw, kb, fan_in, fan_out):
        bound = 1.0 / jnp.sqrt(jnp.float32(fan_in))
        w = jax.random.uniform(kw, (fan_in, fan_out), jnp.float32, -bound, bound)
        b = jax.random.uniform(kb, (fan_out,), jnp.float32, -bound, bound)
        return w, b

    w1, b1 = lin(ks[0], ks[1], input_dim, hidden)
    w2, b2 = lin(ks[2], ks[3], hidden, hidden)
    w3, b3 = lin(ks[4], ks[5], hidden, output_dim)
    return {"w1": w1, "b1": b1, "w2": w2, "b2": b2, "w3": w3, "b3": b3}


def reference_forward(x, params):
    h1 = jnp.maximum(x @ params["w1"] + params["b1"], 0.0)
    h2 = jnp.maximum(h1 @ params["w2"] + params["b2"], 0.0)
    logits = h2 @ params["w3"] + params["b3"]
    return jax.nn.log_softmax(logits, axis=-1)


if __name__ == "__main__":
    key = jax.random.PRNGKey(0)
    k_params, k_x1, k_x2 = jax.random.split(key, 3)

    input_dim, output_dim = 4, 2          # CartPole: obs dim 4, 2 actions
    params = init_params(k_params, input_dim, output_dim)
    w1_aug = pack_w1_aug(params, input_dim, output_dim)
    w23 = pack_w23(params, output_dim)

    # Small single-block case (8 observations -> padded to one 128-lane block).
    x_small = jax.random.normal(k_x1, (8, input_dim), dtype=jnp.float32)
    out_small = jax.block_until_ready(
        policy_network_forward(x_small, w1_aug, w23,
                               input_dim=input_dim, out_dim=output_dim))

    # Multi-block rollout case exercising batch tiling + padding
    # (B=300 -> TB=256 -> grid=(2,), padded to 512).
    x_multi = jax.random.normal(k_x2, (300, input_dim), dtype=jnp.float32)
    out_multi = jax.block_until_ready(
        policy_network_forward(x_multi, w1_aug, w23,
                               input_dim=input_dim, out_dim=output_dim))

    ref_small = reference_forward(x_small, params)
    ref_multi = reference_forward(x_multi, params)

    assert out_small.shape == (8, output_dim)
    assert out_multi.shape == (300, output_dim)
    assert bool(jnp.allclose(out_small, ref_small, atol=1e-4, rtol=1e-4))
    assert bool(jnp.allclose(out_multi, ref_multi, atol=1e-4, rtol=1e-4))
    # log-softmax rows must sum (in prob space) to ~1
    probs_sum = jnp.sum(jnp.exp(out_small), axis=-1)
    assert bool(jnp.all(jnp.abs(probs_sum - 1.0) < 1e-4))

    print("KERNEL_OK")
</pallas_src>

<mosaic_0001>
module attributes {stable_mosaic.version = 11 : i64} {
  func.func @policy_kernel(%arg0: i32, %arg1: memref<8x128xf32, #tpu.memory_space<vmem>>, %arg2: memref<64x8xf32, #tpu.memory_space<vmem>>, %arg3: memref<72x64xf32, #tpu.memory_space<vmem>>, %arg4: memref<2x128xf32, #tpu.memory_space<vmem>>) attributes {dimension_semantics = [#tpu.dimension_semantics<parallel>], iteration_bounds = array<i64: 1>, scalar_prefetch = 0 : i64, scratch_operands = 0 : i64, tpu.core_type = #tpu.core_type<tc>, window_params = [{transform_indices = @transform_0, window_bounds = array<i64: 8, 128>}, {pipeline_mode = #tpu.pipeline_mode<synchronous>, transform_indices = @transform_1, window_bounds = array<i64: 64, 8>}, {pipeline_mode = #tpu.pipeline_mode<synchronous>, transform_indices = @transform_2, window_bounds = array<i64: 72, 64>}, {transform_indices = @transform_3, window_bounds = array<i64: 2, 128>}]} {
    %c0 = arith.constant 0 : index
    %c0_0 = arith.constant 0 : index
    %0 = vector.load %arg1[%c0, %c0_0] : memref<8x128xf32, #tpu.memory_space<vmem>>, vector<8x128xf32>
    %c0_1 = arith.constant 0 : index
    %c0_2 = arith.constant 0 : index
    %1 = vector.load %arg2[%c0_1, %c0_2] : memref<64x8xf32, #tpu.memory_space<vmem>>, vector<64x8xf32>
    %c0_3 = arith.constant 0 : index
    %c0_4 = arith.constant 0 : index
    %2 = vector.load %arg3[%c0_3, %c0_4] : memref<72x64xf32, #tpu.memory_space<vmem>>, vector<64x64xf32>
    %c64 = arith.constant 64 : index
    %c0_5 = arith.constant 0 : index
    %3 = vector.load %arg3[%c64, %c0_5] : memref<72x64xf32, #tpu.memory_space<vmem>>, vector<8x64xf32>
    %4 = vector.extract_strided_slice %1 {offsets = [0, 5], sizes = [64, 1], strides = [1, 1]} : vector<64x8xf32> to vector<64x1xf32>
    %5 = vector.extract_strided_slice %1 {offsets = [0, 6], sizes = [8, 1], strides = [1, 1]} : vector<64x8xf32> to vector<8x1xf32>
    %cst = arith.constant dense<0.000000e+00> : vector<64x128xf32>
    %6 = tpu.matmul %1, %0, %cst {dimension_numbers = #tpu.dot_dimension_numbers<[1], [0], [0], [1], [0, 0, 1, 1], [], []>} : vector<64x8xf32>, vector<8x128xf32>, vector<64x128xf32> -> vector<64x128xf32>
    %cst_6 = arith.constant 0.000000e+00 : f32
    %7 = vector.broadcast %cst_6 : f32 to vector<64x128xf32>
    %8 = arith.maximumf %6, %7 : vector<64x128xf32>
    %cst_7 = arith.constant dense<0.000000e+00> : vector<64x128xf32>
    %9 = tpu.matmul %2, %8, %cst_7 {dimension_numbers = #tpu.dot_dimension_numbers<[1], [0], [0], [1], [0, 0, 1, 1], [], []>} : vector<64x64xf32>, vector<64x128xf32>, vector<64x128xf32> -> vector<64x128xf32>
    %10 = vector.broadcast %4 : vector<64x1xf32> to vector<64x128xf32>
    %11 = arith.addf %9, %10 : vector<64x128xf32>
    %cst_8 = arith.constant 0.000000e+00 : f32
    %12 = vector.broadcast %cst_8 : f32 to vector<64x128xf32>
    %13 = arith.maximumf %11, %12 : vector<64x128xf32>
    %cst_9 = arith.constant dense<0.000000e+00> : vector<8x128xf32>
    %14 = tpu.matmul %3, %13, %cst_9 {dimension_numbers = #tpu.dot_dimension_numbers<[1], [0], [0], [1], [0, 0, 1, 1], [], []>} : vector<8x64xf32>, vector<64x128xf32>, vector<8x128xf32> -> vector<8x128xf32>
    %15 = vector.broadcast %5 : vector<8x1xf32> to vector<8x128xf32>
    %16 = arith.addf %14, %15 : vector<8x128xf32>
    %17 = vector.extract_strided_slice %16 {offsets = [0, 0], sizes = [1, 128], strides = [1, 1]} : vector<8x128xf32> to vector<1x128xf32>
    %18 = vector.extract_strided_slice %16 {offsets = [1, 0], sizes = [1, 128], strides = [1, 1]} : vector<8x128xf32> to vector<1x128xf32>
    %19 = arith.subf %18, %17 : vector<1x128xf32>
    %cst_10 = arith.constant 0.000000e+00 : f32
    %20 = vector.broadcast %cst_10 : f32 to vector<1x128xf32>
    %21 = arith.maximumf %19, %20 : vector<1x128xf32>
    %22 = math.absf %19 : vector<1x128xf32>
    %cst_11 = arith.constant 0.000000e+00 : f32
    %23 = vector.broadcast %cst_11 : f32 to vector<1x128xf32>
    %24 = arith.subf %23, %22 : vector<1x128xf32>
    %25 = math.exp %24 : vector<1x128xf32>
    %cst_12 = arith.constant 1.000000e+00 : f32
    %26 = vector.broadcast %cst_12 : f32 to vector<1x128xf32>
    %27 = arith.addf %26, %25 : vector<1x128xf32>
    %28 = math.log %27 : vector<1x128xf32>
    %29 = arith.addf %21, %28 : vector<1x128xf32>
    %cst_13 = arith.constant 0.000000e+00 : f32
    %30 = vector.broadcast %cst_13 : f32 to vector<1x128xf32>
    %31 = arith.subf %30, %29 : vector<1x128xf32>
    %c0_14 = arith.constant 0 : index
    %c0_15 = arith.constant 0 : index
    %32 = vector.load %arg4[%c0_14, %c0_15] : memref<2x128xf32, #tpu.memory_space<vmem>>, vector<1x128xf32>
    tpu.vector_store %arg4[%c0_14, %c0_15], %31 {strides = array<i32>} : memref<2x128xf32, #tpu.memory_space<vmem>>, vector<1x128xf32>,
    %33 = arith.subf %19, %29 : vector<1x128xf32>
    %c1 = arith.constant 1 : index
    %c0_16 = arith.constant 0 : index
    %34 = vector.load %arg4[%c1, %c0_16] : memref<2x128xf32, #tpu.memory_space<vmem>>, vector<1x128xf32>
    tpu.vector_store %arg4[%c1, %c0_16], %33 {strides = array<i32>} : memref<2x128xf32, #tpu.memory_space<vmem>>, vector<1x128xf32>,
    return
  }
  func.func @transform_0(%arg0: i32) -> (i32, i32) {
    %c0_i32 = arith.constant 0 : i32
    %c0_i32_0 = arith.constant 0 : i32
    return %c0_i32, %arg0 : i32, i32
  }
  func.func @transform_1(%arg0: i32) -> (i32, i32) {
    %c0_i32 = arith.constant 0 : i32
    %c0_i32_0 = arith.constant 0 : i32
    %c0_i32_1 = arith.constant 0 : i32
    return %c0_i32, %c0_i32_0 : i32, i32
  }
  func.func @transform_2(%arg0: i32) -> (i32, i32) {
    %c0_i32 = arith.constant 0 : i32
    %c0_i32_0 = arith.constant 0 : i32
    %c0_i32_1 = arith.constant 0 : i32
    return %c0_i32, %c0_i32_0 : i32, i32
  }
  func.func @transform_3(%arg0: i32) -> (i32, i32) {
    %c0_i32 = arith.constant 0 : i32
    %c0_i32_0 = arith.constant 0 : i32
    return %c0_i32, %arg0 : i32, i32
  }
}

</mosaic_0001>

<llo_original>
// kernel: tpu_custom_call.1
$region0: #{tpu_custom_call.1}
  #allocation0 [shape = 'u32[]', space=smem, size = 0x4, offset = 0x4, fixed_abs, tag = 'smem constant byte address 0x4 - core index']
  #allocation1 [shape = 'u32[72,128]{1,0:T(1,128)}', space=vmem, size = 0x9000, scoped, tag = 'internal scratch']
  %s0 = inlined_call_operand.vmem [shape: f32[8,128], index: 0, kind: input, shape index: {}]
  %s1 = inlined_call_operand.vmem [shape: f32[64,8], index: 1, kind: input, shape index: {}]
  %s2 = inlined_call_operand.vmem [shape: f32[72,64], index: 2, kind: input, shape index: {}]
  %s3 = inlined_call_operand.hbm [shape: f32[2,128], index: 3, kind: output, shape index: {}]
  %s4 = sld [smem:[#allocation0]]
  $region22: #{tpu_custom_call.1} parent=0
    _
  %s6 = ssub.s32 1, %s4
  %s7 = scalar_select 0, %s6, %s4
  $region1: #{tpu_custom_call.1} parent=0
    #allocation2 [shape = 'u8[1024]{0}', space=vmem, size = 0x400, scoped, tag = 'output window, operand 0, single buffered']
    #allocation3 [shape = 's32[1]{0}', space=sflag, size = 0x4, scoped, tag = 'scoped memory for tpu_custom_call.1']
    %8 = vsyncpa [#allocation3], 0
    // Predicated region
    $region2: #{tpu_custom_call.1} parent=1 // pred_check
      _
    $region3: #{tpu_custom_call.1} parent=1 // pred_check_branch
      %10 = sbr.rel (0) target = $region5
    $region4: #{tpu_custom_call.1} parent=1 // pred_region
      _
    $region5: #{tpu_custom_call.1} parent=1 // pred_fallthru
      _
    // Predicated region
    $region6: #{tpu_custom_call.1} parent=1 // pred_check
      _
    $region7: #{tpu_custom_call.1} parent=1 // pred_check_branch
      %12 = sbr.rel (0) target = $region9
    $region8: #{tpu_custom_call.1} parent=1 // pred_region
      _
    $region9: #{tpu_custom_call.1} parent=1 // pred_fallthru
      _
    // Predicated region
    $region10: #{tpu_custom_call.1} parent=1 // pred_check
      _
    $region11: #{tpu_custom_call.1} parent=1 // pred_check_branch
      %14 = sbr.rel (0) target = $region13
    $region12: #{tpu_custom_call.1} parent=1 // pred_region
      _
    $region13: #{tpu_custom_call.1} parent=1 // pred_fallthru
      _
    %v15 = vld [vmem:[%s0] sm:$0xff]
    %v16 = vld [vmem:[%s1] sm:$0xff]
    %v17 = vld [vmem:[%s1 + $0x8] sm:$0xff]
    %v18 = vld [vmem:[%s1 + $0x10] sm:$0xff]
    %v19 = vld [vmem:[%s1 + $0x18] sm:$0xff]
    %v20 = vld [vmem:[%s1 + $0x20] sm:$0xff]
    %v21 = vld [vmem:[%s1 + $0x28] sm:$0xff]
    %v22 = vld [vmem:[%s1 + $0x30] sm:$0xff]
    %v23 = vld [vmem:[%s1 + $0x38] sm:$0xff]
    %v24 = vld [vmem:[%s2] sm:$0xff]
    %v25 = vld [vmem:[%s2 + $0x8] sm:$0xff]
    %v26 = vld [vmem:[%s2 + $0x10] sm:$0xff]
    %v27 = vld [vmem:[%s2 + $0x18] sm:$0xff]
    %v28 = vld [vmem:[%s2 + $0x20] sm:$0xff]
    %v29 = vld [vmem:[%s2 + $0x28] sm:$0xff]
    %v30 = vld [vmem:[%s2 + $0x30] sm:$0xff]
    %v31 = vld [vmem:[%s2 + $0x38] sm:$0xff]
    %v32 = vld [vmem:[%s2 + $0x40] sm:$0xff]
    %vm33 = vcmask 64512
    %v35 = vsel %vm33, %v16, 0
    %v38 = vsel %vm33, %v17, 0
    %v41 = vsel %vm33, %v18, 0
    %v44 = vsel %vm33, %v19, 0
    %v47 = vsel %vm33, %v20, 0
    %v50 = vsel %vm33, %v21, 0
    %v53 = vsel %vm33, %v22, 0
    %v56 = vsel %vm33, %v23, 0
    %58 = vmatpush.msra.mxu0 0.0
    %59 = vmatpush.msra.mxu0 0.0
    %60 = vmatpush.msra.mxu0 0.0
    %61 = vmatpush.msra.mxu0 0.0
    %62 = vmatpush.msra.mxu0 0.0
    %63 = vmatpush.msra.mxu0 0.0
    %64 = vmatpush.msra.mxu0 0.0
    %65 = vmatpush.msra.mxu0 0.0
    %66 = vmatpush.msra.mxu0 0.0
    %67 = vmatpush.msra.mxu0 0.0
    %68 = vmatpush.msra.mxu0 0.0
    %69 = vmatpush.msra.mxu0 0.0
    %70 = vmatpush.msra.mxu0 0.0
    %71 = vmatpush.msra.mxu0 0.0
    %72 = vmatpush.msra.mxu0 0.0
    %73 = vmatpush.msra.mxu0 %v15
    %74 = vmatmul.f32.gmra.mxu0 %v35
    %v75 = vpop.f32.mrf.mxu0
    %v76 = vadd.f32 0.0, %v75
    %77 = vmatmul.f32.gmra.mxu0 %v38
    %v78 = vpop.f32.mrf.mxu0
    %v79 = vadd.f32 0.0, %v78
    %80 = vmatmul.f32.gmra.mxu0 %v41
    %v81 = vpop.f32.mrf.mxu0
    %v82 = vadd.f32 0.0, %v81
    %83 = vmatmul.f32.gmra.mxu0 %v44
    %v84 = vpop.f32.mrf.mxu0
    %v85 = vadd.f32 0.0, %v84
    %86 = vmatmul.f32.gmra.mxu0 %v47
    %v87 = vpop.f32.mrf.mxu0
    %v88 = vadd.f32 0.0, %v87
    %89 = vmatmul.f32.gmra.mxu0 %v50
    %v90 = vpop.f32.mrf.mxu0
    %v91 = vadd.f32 0.0, %v90
    %92 = vmatmul.f32.gmra.mxu0 %v53
    %v93 = vpop.f32.mrf.mxu0
    %v94 = vadd.f32 0.0, %v93
    %95 = vmatmul.f32.gmra.mxu0 %v56
    %v96 = vpop.f32.mrf.mxu0
    %v97 = vadd.f32 0.0, %v96
    %98 = vdwg.mxu0
    %v99 = vmax.f32 %v76, 0.0
    %v100 = vmax.f32 %v79, 0.0
    %v101 = vmax.f32 %v82, 0.0
    %v102 = vmax.f32 %v85, 0.0
    %v103 = vmax.f32 %v88, 0.0
    %v104 = vmax.f32 %v91, 0.0
    %v105 = vmax.f32 %v94, 0.0
    %v106 = vmax.f32 %v97, 0.0
    %107 = vset.pattern.permute.xlu0 5
    %108 = vperm.xlu0 %107, %v16
    %v109 = vpop.permute.xlu0 %108
    %111 = vset.pattern.permute.xlu0 5
    %112 = vperm.xlu0 %111, %v17
    %v113 = vpop.permute.xlu0 %112
    %115 = vset.pattern.permute.xlu0 5
    %116 = vperm.xlu0 %115, %v18
    %v117 = vpop.permute.xlu0 %116
    %119 = vset.pattern.permute.xlu0 5
    %120 = vperm.xlu0 %119, %v19
    %v121 = vpop.permute.xlu0 %120
    %123 = vset.pattern.permute.xlu0 5
    %124 = vperm.xlu0 %123, %v20
    %v125 = vpop.permute.xlu0 %124
    %127 = vset.pattern.permute.xlu0 5
    %128 = vperm.xlu0 %127, %v21
    %v129 = vpop.permute.xlu0 %128
    %131 = vset.pattern.permute.xlu0 5
    %132 = vperm.xlu0 %131, %v22
    %v133 = vpop.permute.xlu0 %132
    %135 = vset.pattern.permute.xlu0 5
    %136 = vperm.xlu0 %135, %v23
    %v137 = vpop.permute.xlu0 %136
    %vm139 = vcmask 523264
    %v141 = vsel %vm139, %v24, 0
    %v144 = vsel %vm139, %v25, 0
    %v147 = vsel %vm139, %v26, 0
    %v150 = vsel %vm139, %v27, 0
    %v153 = vsel %vm139, %v28, 0
    %v156 = vsel %vm139, %v29, 0
    %v159 = vsel %vm139, %v30, 0
    %v162 = vsel %vm139, %v31, 0
    %164 = vmatpush.msra.mxu0 0.0
    %165 = vmatpush.msra.mxu0 0.0
    %166 = vmatpush.msra.mxu0 0.0
    %167 = vmatpush.msra.mxu0 0.0
    %168 = vmatpush.msra.mxu0 0.0
    %169 = vmatpush.msra.mxu0 0.0
    %170 = vmatpush.msra.mxu0 0.0
    %171 = vmatpush.msra.mxu0 0.0
    %172 = vmatpush.msra.mxu0 %v106
    %173 = vmatpush.msra.mxu0 %v105
    %174 = vmatpush.msra.mxu0 %v104
    %175 = vmatpush.msra.mxu0 %v103
    %176 = vmatpush.msra.mxu0 %v102
    %177 = vmatpush.msra.mxu0 %v101
    %178 = vmatpush.msra.mxu0 %v100
    %179 = vmatpush.msra.mxu0 %v99
    %180 = vmatmul.f32.gmra.mxu0 %v141
    %v181 = vpop.f32.mrf.mxu0
    %v182 = vadd.f32 %v109, %v181
    %183 = vmatmul.f32.gmra.mxu0 %v144
    %v184 = vpop.f32.mrf.mxu0
    %v185 = vadd.f32 %v113, %v184
    %186 = vmatmul.f32.gmra.mxu0 %v147
    %v187 = vpop.f32.mrf.mxu0
    %v188 = vadd.f32 %v117, %v187
    %189 = vmatmul.f32.gmra.mxu0 %v150
    %v190 = vpop.f32.mrf.mxu0
    %v191 = vadd.f32 %v121, %v190
    %192 = vmatmul.f32.gmra.mxu0 %v153
    %v193 = vpop.f32.mrf.mxu0
    %v194 = vadd.f32 %v125, %v193
    %195 = vmatmul.f32.gmra.mxu0 %v156
    %v196 = vpop.f32.mrf.mxu0
    %v197 = vadd.f32 %v129, %v196
    %198 = vmatmul.f32.gmra.mxu0 %v159
    %v199 = vpop.f32.mrf.mxu0
    %v200 = vadd.f32 %v133, %v199
    %201 = vmatmul.f32.gmra.mxu0 %v162
    %v202 = vpop.f32.mrf.mxu0
    %v203 = vadd.f32 %v137, %v202
    %204 = vdwg.mxu0
    %v205 = vmax.f32 %v182, 0.0
    %v206 = vmax.f32 %v185, 0.0
    %v207 = vmax.f32 %v188, 0.0
    %v208 = vmax.f32 %v191, 0.0
    %v209 = vmax.f32 %v194, 0.0
    %v210 = vmax.f32 %v197, 0.0
    %v211 = vmax.f32 %v200, 0.0
    %v212 = vmax.f32 %v203, 0.0
    %213 = vset.pattern.permute.xlu0 6
    %214 = vperm.xlu0 %213, %v16
    %v215 = vpop.permute.xlu0 %214
    %v218 = vsel %vm139, %v32, 0
    %220 = vmatpush.msra.mxu0 0.0
    %221 = vmatpush.msra.mxu0 0.0
    %222 = vmatpush.msra.mxu0 0.0
    %223 = vmatpush.msra.mxu0 0.0
    %224 = vmatpush.msra.mxu0 0.0
    %225 = vmatpush.msra.mxu0 0.0
    %226 = vmatpush.msra.mxu0 0.0
    %227 = vmatpush.msra.mxu0 0.0
    %228 = vmatpush.msra.mxu0 %v212
    %229 = vmatpush.msra.mxu0 %v211
    %230 = vmatpush.msra.mxu0 %v210
    %231 = vmatpush.msra.mxu0 %v209
    %232 = vmatpush.msra.mxu0 %v208
    %233 = vmatpush.msra.mxu0 %v207
    %234 = vmatpush.msra.mxu0 %v206
    %235 = vmatpush.msra.mxu0 %v205
    %236 = vmatmul.f32.gmra.mxu0 %v218
    %v237 = vpop.f32.mrf.mxu0
    %v238 = vadd.f32 %v215, %v237
    %239 = vdwg.mxu0
    %v241 = vrot.slane %v238, 7
    %v243 = vsub.f32 %v238, %v241
    %v244 = vmax.f32 %v243, 0.0
    %v245 = vand.u32 2147483647, %v243
    %v246 = vsub.f32 0.0, %v245
    %v247 = vmul.f32 %v246, 1.442695
    %v248 = vpow.pop %v247
    %v249 = vadd.f32 %v248, 1.0
    %v250 = vlog2.pop %v249
    %v251 = vmul.f32 %v250, 0.6931472
    %v252 = vadd.f32 %v244, %v251
    %v253 = vsub.f32 0.0, %v252
    %254 = vst [vmem:[#allocation2 - $0x1] sm:$0x2] %v253
    %v255 = vsub.f32 %v243, %v252
    %256 = vst [vmem:[#allocation2] sm:$0x2] %v255
    // Predicated region
    $region14: #{tpu_custom_call.1} parent=1 // pred_check
      _
    $region15: #{tpu_custom_call.1} parent=1 // pred_check_branch
      %258 = sbr.rel (0) target = $region17
    $region16: #{tpu_custom_call.1} parent=1 // pred_region
      %260 = vsyncadd [#allocation3], 0
      %s262 = sshll.u32 [#allocation2], 4
      %s263 = int_to_ptr.vmem [resolvable:$true] %s262
      %s264 = sshll.u32 %s3, 4
      %s265 = int_to_ptr.hbm [resolvable:$true] %s264
      %267 = dma.vmem_to_hbm [thread:$0]  %s263, 32, %s265, [#allocation3]
    $region17: #{tpu_custom_call.1} parent=1 // pred_fallthru
      _
    // Predicated region
    $region18: #{tpu_custom_call.1} parent=1 // pred_check
      _
    $region19: #{tpu_custom_call.1} parent=1 // pred_check_branch
      %269 = sbr.rel (0) target = $region21
    $region20: #{tpu_custom_call.1} parent=1 // pred_region
      %271 = dma.done [#allocation3], 32
    $region21: #{tpu_custom_call.1} parent=1 // pred_fallthru
      _
    %272 = vsyncpa [#allocation3], 1

</llo_original>
